<compile_context>
chip_gen: v7x
topology: tpu7x:2x2x1
jax: 0.10.0
libtpu: 0.0.40
codegen_flags: <defaults>
</compile_context>

<pallas_src>
import functools

import jax
import jax.numpy as jnp
from jax.experimental import pallas as pl
from jax.experimental.pallas import tpu as pltpu


def _round_up(v, m):
    return ((v + m - 1) // m) * m


def _trojan_kernel(thrd_ref, x_ref, w_ref, b_ref, feat_ref, edge_ref, *, split):
    # thrd_ref: SMEM scalar-prefetch ref, shape (1,)
    # x_ref:   (tm, nfeat) f32  -> cast to bf16 in-kernel (hides under MXU)
    # w_ref:   (nfeat, split + eout_p) bf16 fused weight slab (VMEM-resident)
    # b_ref:   (1, split + eout_p) f32 fused bias (VMEM-resident)
    acc = jnp.dot(x_ref[...].astype(jnp.bfloat16), w_ref[...],
                  preferred_element_type=jnp.float32)

    # feat head: Linear(nfeat, nout*nfeat).  split % 128 == 0 -> lane-aligned slice.
    feat_ref[...] = (acc[:, :split] + b_ref[:, :split]).astype(feat_ref.dtype)

    # edge head: Linear(nfeat, nout*(nout-1)/2) + GradWhere hard threshold (strict >).
    # NOTE: padded edge lanes have logit == 0; if thrd < 0 they store 1.0 -- harmless,
    # the wrapper slices padding off; never consume the padded buffer directly.
    edge_logits = acc[:, split:] + b_ref[:, split:]
    thrd = thrd_ref[0]
    edge_ref[...] = jnp.where(edge_logits > thrd,
                              jnp.float32(1.0),
                              jnp.float32(0.0)).astype(edge_ref.dtype)


def prepare_trojan_weights(w_feat, b_feat, w_edge, b_edge):
    """One-time weight prep: lane-pad both heads to multiples of 128, concatenate
    into one (nfeat, wide) slab, cast matmul weights to bf16.  Hoisted out of the
    forward so repeated trigger-generation calls don't pay these XLA ops each time.
    Weights are stored transposed relative to torch nn.Linear (kernel does x @ W + b)."""
    nfeat, fout = w_feat.shape
    eout = w_edge.shape[1]
    fout_p = _round_up(fout, 128)
    eout_p = _round_up(eout, 128)

    w_fused = jnp.concatenate(
        [jnp.pad(w_feat, ((0, 0), (0, fout_p - fout))),
         jnp.pad(w_edge, ((0, 0), (0, eout_p - eout)))],
        axis=1).astype(jnp.bfloat16)
    b_fused = jnp.concatenate(
        [jnp.pad(b_feat, (0, fout_p - fout)),
         jnp.pad(b_edge, (0, eout_p - eout))]
    ).reshape(1, fout_p + eout_p).astype(jnp.float32)

    return dict(w_fused=w_fused, b_fused=b_fused,
                nfeat=nfeat, fout=fout, eout=eout, fout_p=fout_p, eout_p=eout_p)


def graph_trojan_net_forward(x, prepared, thrd, *, row_tile=512):
    """x: (N, nfeat) f32; `prepared` from prepare_trojan_weights().
    Returns (feat, edge_weight) in f32, matching the PyTorch forward."""
    N, nfeat = x.shape
    assert nfeat == prepared["nfeat"]
    fout, eout = prepared["fout"], prepared["eout"]
    fout_p, eout_p = prepared["fout_p"], prepared["eout_p"]
    wide = fout_p + eout_p

    # Row tile: multiple of 16 (bf16 output sublane tile), as large as row_tile for
    # HBM-roofline efficiency, but small enough that the parallel row axis gets
    # >=2 grid steps when N allows (so both v7x TensorCores get work).
    n16 = _round_up(N, 16)
    tm = min(row_tile, max(16, _round_up(n16 // 2, 16)))
    n_pad = _round_up(N, tm)
    x_in = x if n_pad == N else jnp.pad(x, ((0, n_pad - N), (0, 0)))
    grid = (n_pad // tm,)

    thrd_arr = jnp.asarray([thrd], dtype=jnp.float32)

    grid_spec = pltpu.PrefetchScalarGridSpec(
        num_scalar_prefetch=1,
        grid=grid,
        in_specs=[
            # x: pipelined per row tile
            pl.BlockSpec((tm, nfeat), lambda i, thrd_ref: (i, 0)),
            # fused weights / biases: constant block index -> resident in VMEM
            pl.BlockSpec((nfeat, wide), lambda i, thrd_ref: (0, 0)),
            pl.BlockSpec((1, wide), lambda i, thrd_ref: (0, 0)),
        ],
        out_specs=[
            pl.BlockSpec((tm, fout_p), lambda i, thrd_ref: (i, 0)),
            pl.BlockSpec((tm, eout_p), lambda i, thrd_ref: (i, 0)),
        ],
    )

    feat_p, edge_p = pl.pallas_call(
        functools.partial(_trojan_kernel, split=fout_p),
        out_shape=(
            jax.ShapeDtypeStruct((n_pad, fout_p), jnp.float32),
            # {0,1} mask is lossless in bf16 -> halves edge-head writeback bytes.
            jax.ShapeDtypeStruct((n_pad, eout_p), jnp.bfloat16),
        ),
        grid_spec=grid_spec,
        compiler_params=pltpu.CompilerParams(
            dimension_semantics=("parallel",),  # independent row tiles (v7x 2-TC)
        ),
    )(thrd_arr, x_in, prepared["w_fused"], prepared["b_fused"])

    # Strip lane/row padding; edge mask back to f32 to match the torch output dtype
    # (tiny (N, eout) cast).
    feat = feat_p if (n_pad == N and fout_p == fout) else feat_p[:N, :fout]
    edge_w = edge_p[:N, :eout].astype(jnp.float32)
    return feat, edge_w


# TODO(synk): dropout>0 / layernum>1 paths of __init__ (extra Linear+ReLU+Dropout in
# self.layers) are not exercised here; defaults layernum=1, dropout=0 make it identity.
# TODO(synk): GradWhere.backward (straight-through gradient) is not implemented;
# this is forward-only, matching the requested forward pass.
# NOTE: at tiny N this call is dominated by fixed pallas_call/DMA overhead — batch
# multiple graphs/trigger sets into one call so N reaches >= 2*row_tile when possible.

if __name__ == "__main__":
    # Small, module-consistent shapes.
    N = 64         # number of nodes (rows of node features)
    nfeat = 32     # input feature dim
    nout = 8       # trigger size -> feat out = nout*nfeat = 256, edge out = 28
    fout = nout * nfeat
    eout = (nout * (nout - 1)) // 2

    key = jax.random.PRNGKey(0)
    k_x, k_wf, k_bf, k_we, k_be = jax.random.split(key, 5)

    x = jax.random.normal(k_x, (N, nfeat), dtype=jnp.float32)
    # Deterministic nn.Linear-style init (uniform in +/- 1/sqrt(fan_in)).
    bound = 1.0 / jnp.sqrt(jnp.float32(nfeat))
    w_feat = jax.random.uniform(k_wf, (nfeat, fout), jnp.float32, -bound, bound)
    b_feat = jax.random.uniform(k_bf, (fout,), jnp.float32, -bound, bound)
    w_edge = jax.random.uniform(k_we, (nfeat, eout), jnp.float32, -bound, bound)
    b_edge = jax.random.uniform(k_be, (eout,), jnp.float32, -bound, bound)
    thrd = 0.5

    prepared = prepare_trojan_weights(w_feat, b_feat, w_edge, b_edge)  # one-time
    feat, edge_w = graph_trojan_net_forward(x, prepared, thrd)
    jax.block_until_ready((feat, edge_w))

    assert feat.shape == (N, fout) and edge_w.shape == (N, eout)

    # Reference in plain JAX with the same bf16-rounded matmul inputs (f32 accumulate).
    x_bf = x.astype(jnp.bfloat16).astype(jnp.float32)
    wf_bf = w_feat.astype(jnp.bfloat16).astype(jnp.float32)
    we_bf = w_edge.astype(jnp.bfloat16).astype(jnp.float32)
    feat_ref = x_bf @ wf_bf + b_feat
    edge_logits = x_bf @ we_bf + b_edge
    edge_ref = jnp.where(edge_logits > thrd, 1.0, 0.0)

    assert jnp.allclose(feat, feat_ref, atol=1e-3, rtol=1e-3)
    # Threshold output must match except (at most) where the logit sits numerically
    # on the threshold boundary (accumulation-order ULP differences).
    mismatch = edge_w != edge_ref
    boundary = jnp.abs(edge_logits - thrd) < 1e-3
    assert not bool(jnp.any(mismatch & ~boundary))

    print("KERNEL_OK")
</pallas_src>

<mosaic_0001>
module attributes {stable_mosaic.version = 11 : i64} {
  func.func @_trojan_kernel(%arg0: i32, %arg1: memref<1xf32, #tpu.memory_space<smem>>, %arg2: memref<32x32xf32, #tpu.memory_space<vmem>>, %arg3: memref<32x384xbf16, #tpu.memory_space<vmem>>, %arg4: memref<1x384xf32, #tpu.memory_space<vmem>>, %arg5: memref<32x256xf32, #tpu.memory_space<vmem>>, %arg6: memref<32x128xbf16, #tpu.memory_space<vmem>>) attributes {dimension_semantics = [#tpu.dimension_semantics<parallel>], iteration_bounds = array<i64: 2>, scalar_prefetch = 1 : i64, scratch_operands = 0 : i64, tpu.core_type = #tpu.core_type<tc>, window_params = [{transform_indices = @transform_0, window_bounds = array<i64: 32, 32>}, {pipeline_mode = #tpu.pipeline_mode<synchronous>, transform_indices = @transform_1, window_bounds = array<i64: 32, 384>}, {pipeline_mode = #tpu.pipeline_mode<synchronous>, transform_indices = @transform_2, window_bounds = array<i64: 1, 384>}, {transform_indices = @transform_3, window_bounds = array<i64: 32, 256>}, {transform_indices = @transform_4, window_bounds = array<i64: 32, 128>}]} {
    %c0 = arith.constant 0 : index
    %c0_0 = arith.constant 0 : index
    %0 = vector.load %arg2[%c0, %c0_0] : memref<32x32xf32, #tpu.memory_space<vmem>>, vector<32x32xf32>
    %1 = arith.truncf %0 : vector<32x32xf32> to vector<32x32xbf16>
    %c0_1 = arith.constant 0 : index
    %c0_2 = arith.constant 0 : index
    %2 = vector.load %arg3[%c0_1, %c0_2] : memref<32x384xbf16, #tpu.memory_space<vmem>>, vector<32x384xbf16>
    %cst = arith.constant dense<0.000000e+00> : vector<32x384xf32>
    %3 = tpu.matmul %1, %2, %cst {dimension_numbers = #tpu.dot_dimension_numbers<[1], [0], [0], [1], [0, 0, 1, 1], [], []>} : vector<32x32xbf16>, vector<32x384xbf16>, vector<32x384xf32> -> vector<32x384xf32>
    %4 = vector.extract_strided_slice %3 {offsets = [0, 0], sizes = [32, 256], strides = [1, 1]} : vector<32x384xf32> to vector<32x256xf32>
    %c0_3 = arith.constant 0 : index
    %c0_4 = arith.constant 0 : index
    %5 = vector.load %arg4[%c0_3, %c0_4] : memref<1x384xf32, #tpu.memory_space<vmem>>, vector<1x256xf32>
    %6 = vector.broadcast %5 : vector<1x256xf32> to vector<32x256xf32>
    %7 = arith.addf %4, %6 : vector<32x256xf32>
    %c0_5 = arith.constant 0 : index
    %c0_6 = arith.constant 0 : index
    %8 = vector.load %arg5[%c0_5, %c0_6] : memref<32x256xf32, #tpu.memory_space<vmem>>, vector<32x256xf32>
    tpu.vector_store %arg5[%c0_5, %c0_6], %7 {strides = array<i32>} : memref<32x256xf32, #tpu.memory_space<vmem>>, vector<32x256xf32>,
    %9 = vector.extract_strided_slice %3 {offsets = [0, 256], sizes = [32, 128], strides = [1, 1]} : vector<32x384xf32> to vector<32x128xf32>
    %c0_7 = arith.constant 0 : index
    %c256 = arith.constant 256 : index
    %10 = vector.load %arg4[%c0_7, %c256] : memref<1x384xf32, #tpu.memory_space<vmem>>, vector<1x128xf32>
    %11 = vector.broadcast %10 : vector<1x128xf32> to vector<32x128xf32>
    %12 = arith.addf %9, %11 : vector<32x128xf32>
    %c0_8 = arith.constant 0 : index
    %13 = memref.load %arg1[%c0_8] : memref<1xf32, #tpu.memory_space<smem>>
    %14 = vector.broadcast %13 : f32 to vector<32x128xf32>
    %15 = arith.cmpf ogt, %12, %14 : vector<32x128xf32>
    %cst_9 = arith.constant 1.000000e+00 : f32
    %cst_10 = arith.constant 0.000000e+00 : f32
    %16 = vector.broadcast %cst_9 : f32 to vector<32x128xf32>
    %17 = vector.broadcast %cst_10 : f32 to vector<32x128xf32>
    %18 = arith.select %15, %16, %17 : vector<32x128xi1>, vector<32x128xf32>
    %19 = arith.truncf %18 : vector<32x128xf32> to vector<32x128xbf16>
    %c0_11 = arith.constant 0 : index
    %c0_12 = arith.constant 0 : index
    %20 = vector.load %arg6[%c0_11, %c0_12] : memref<32x128xbf16, #tpu.memory_space<vmem>>, vector<32x128xbf16>
    tpu.vector_store %arg6[%c0_11, %c0_12], %19 {strides = array<i32>} : memref<32x128xbf16, #tpu.memory_space<vmem>>, vector<32x128xbf16>,
    return
  }
  func.func @transform_0(%arg0: i32, %arg1: memref<1xf32, #tpu.memory_space<smem>>) -> (i32, i32) {
    %c0_i32 = arith.constant 0 : i32
    %c0_i32_0 = arith.constant 0 : i32
    return %arg0, %c0_i32 : i32, i32
  }
  func.func @transform_1(%arg0: i32, %arg1: memref<1xf32, #tpu.memory_space<smem>>) -> (i32, i32) {
    %c0_i32 = arith.constant 0 : i32
    %c0_i32_0 = arith.constant 0 : i32
    %c0_i32_1 = arith.constant 0 : i32
    return %c0_i32, %c0_i32_0 : i32, i32
  }
  func.func @transform_2(%arg0: i32, %arg1: memref<1xf32, #tpu.memory_space<smem>>) -> (i32, i32) {
    %c0_i32 = arith.constant 0 : i32
    %c0_i32_0 = arith.constant 0 : i32
    %c0_i32_1 = arith.constant 0 : i32
    return %c0_i32, %c0_i32_0 : i32, i32
  }
  func.func @transform_3(%arg0: i32, %arg1: memref<1xf32, #tpu.memory_space<smem>>) -> (i32, i32) {
    %c0_i32 = arith.constant 0 : i32
    %c0_i32_0 = arith.constant 0 : i32
    return %arg0, %c0_i32 : i32, i32
  }
  func.func @transform_4(%arg0: i32, %arg1: memref<1xf32, #tpu.memory_space<smem>>) -> (i32, i32) {
    %c0_i32 = arith.constant 0 : i32
    %c0_i32_0 = arith.constant 0 : i32
    return %arg0, %c0_i32 : i32, i32
  }
}

</mosaic_0001>

<llo_original>
// kernel: tpu_custom_call.1
$region0: #{tpu_custom_call.1}
  #allocation0 [shape = 'u32[]', space=smem, size = 0x4, offset = 0x4, fixed_abs, tag = 'smem constant byte address 0x4 - core index']
  #allocation1 [shape = 'u32[144,128]{1,0:T(1,128)}', space=vmem, size = 0x12000, scoped, tag = 'internal scratch']
  #allocation2 [shape = 's32[1]{0}', space=sflag, size = 0x4, scoped, tag = 'scoped memory for tpu_custom_call.1']
  #allocation3 [shape = 'f32[1]{0:T(128)S(6)}', space=smem, size = 0x200, scoped, tag = 'prefetched SMEM operand 0']
  %s0 = inlined_call_operand.<no memory space> [shape: f32[1], index: 0, kind: input, shape index: {}]
  %s1 = inlined_call_operand.vmem [shape: f32[64,32], index: 1, kind: input, shape index: {}]
  %s2 = inlined_call_operand.vmem [shape: bf16[32,384], index: 2, kind: input, shape index: {}]
  %s3 = inlined_call_operand.vmem [shape: f32[1,384], index: 3, kind: input, shape index: {}]
  %s4 = inlined_call_operand.hbm [shape: f32[64,256], index: 4, kind: output, shape index: {0}]
  %s5 = inlined_call_operand.hbm [shape: bf16[64,128], index: 5, kind: output, shape index: {1}]
  %6 = xla_tuple %s4, %s5
  %s7 = sld [smem:[#allocation0]]
  $region53: #{tpu_custom_call.1} parent=0
    _
  %s9 = ssub.s32 1, %s7
  %s10 = scalar_select 0, %s9, %s7
  %11 = sst [smem:[#allocation3]] %s0
  $region1: #{tpu_custom_call.1} parent=0
    #allocation4 [shape = 'u8[65536]{0}', space=vmem, size = 0x10000, scoped, tag = 'output window, operand 0']
    #allocation5 [shape = 's32[2]{0}', space=sflag, size = 0x8, scoped, tag = 'scoped memory for tpu_custom_call.1']
    #allocation6 [shape = 'u8[16384]{0}', space=vmem, size = 0x4000, scoped, tag = 'output window, operand 1']
    #allocation7 [shape = 's32[2]{0}', space=sflag, size = 0x8, scoped, tag = 'scoped memory for tpu_custom_call.1']
    %12 = vsyncpa [#allocation5], 0
    %s13 = scalar_lea.sflag [#allocation5], 1
    %14 = vsyncpa %s13, 0
    %15 = vsyncpa [#allocation7], 0
    %s16 = scalar_lea.sflag [#allocation7], 1
    %17 = vsyncpa %s16, 0
    loop: start=0, step=1, limit=4
    $region2: #{tpu_custom_call.1} parent=1 // loop_pre_header
      _
    $region3: #{tpu_custom_call.1} parent=1 // loop_header
      %s19 = sphi 0, %s23
      %p20 = scmp.ge.s32.totalorder %s19, 4
      %s29 = sphi 0, %s31
      %s32 = sphi 0, %s29
      %s33 = sphi 0, %s32
      %s49 = sphi 0, %s33
      %s53 = sphi 0, %s53
      %s55 = sphi 0, %s53
      %s56 = sphi 0, %s55
      %s70 = sphi 0, %s56
      %s74 = sphi 0, %s74
      %s76 = sphi 0, %s74
      %s77 = sphi 0, %s76
      %s91 = sphi 0, %s77
      %s97 = sphi 0, %s99
      %s100 = sphi 0, %s97
      %s101 = sphi 0, %s100
      %s117 = sphi 0, %s101
      %s123 = sphi 0, %s125
      %s126 = sphi 0, %s123
      %s127 = sphi 0, %s126
      %s143 = sphi 0, %s127
    $region4: #{tpu_custom_call.1} parent=1 // loop_header_branch
      %22 = sbr.rel (%p20) target = $region8
    $region5: #{tpu_custom_call.1} parent=1 // loop_body
      %s24 = ssub.s32 %s19, 1
      %s25 = ssub.s32 %s19, 2
      %s26 = sadd.s32 %s19, 1
      %s27 = ssub.s32 %s19, %s26
      %p28 = scmp.eq.s32.totalorder %s27, 0
      %s30 = sadd.s32 %s29, 1
      %s31 = scalar_select %p28, %s29, %s30
      %p34 = pneg %p28
      %p35 = scmp.eq.s32.totalorder %s19, 1
      %p36 = por %p34, %p35
      %p37 = scmp.ne.s32.totalorder %s29, %s32
      %p38 = scmp.eq.s32.totalorder %s19, 0
      %p39 = por %p37, %p38
      %p40 = scmp.ne.s32.totalorder %s29, %s32
      %p41 = scmp.eq.s32.totalorder %s24, 1
      %p42 = por %p40, %p41
      %p43 = scmp.ne.s32.totalorder %s32, %s33
      %p44 = scmp.eq.s32.totalorder %s24, 0
      %p45 = por %p43, %p44
      %p46 = scmp.ne.s32.totalorder %s32, %s33
      %p47 = scmp.eq.s32.totalorder %s25, 1
      %p48 = por %p46, %p47
      %p50 = scmp.ne.s32.totalorder %s33, %s49
      %p51 = scmp.eq.s32.totalorder %s25, 0
      %p52 = por %p50, %p51
      %s54 = sadd.s32 %s53, 1
      %p57 = scmp.eq.s32.totalorder %s19, 1
      %p58 = scmp.ne.s32.totalorder %s53, %s55
      %p59 = scmp.eq.s32.totalorder %s19, 0
      %p60 = por %p58, %p59
      %p61 = scmp.ne.s32.totalorder %s53, %s55
      %p62 = scmp.eq.s32.totalorder %s24, 1
      %p63 = por %p61, %p62
      %p64 = scmp.ne.s32.totalorder %s55, %s56
      %p65 = scmp.eq.s32.totalorder %s24, 0
      %p66 = por %p64, %p65
      %p67 = scmp.ne.s32.totalorder %s55, %s56
      %p68 = scmp.eq.s32.totalorder %s25, 1
      %p69 = por %p67, %p68
      %p71 = scmp.ne.s32.totalorder %s56, %s70
      %p72 = scmp.eq.s32.totalorder %s25, 0
      %p73 = por %p71, %p72
      %s75 = sadd.s32 %s74, 1
      %p78 = scmp.eq.s32.totalorder %s19, 1
      %p79 = scmp.ne.s32.totalorder %s74, %s76
      %p80 = scmp.eq.s32.totalorder %s19, 0
      %p81 = por %p79, %p80
      %p82 = scmp.ne.s32.totalorder %s74, %s76
      %p83 = scmp.eq.s32.totalorder %s24, 1
      %p84 = por %p82, %p83
      %p85 = scmp.ne.s32.totalorder %s76, %s77
      %p86 = scmp.eq.s32.totalorder %s24, 0
      %p87 = por %p85, %p86
      %p88 = scmp.ne.s32.totalorder %s76, %s77
      %p89 = scmp.eq.s32.totalorder %s25, 1
      %p90 = por %p88, %p89
      %p92 = scmp.ne.s32.totalorder %s77, %s91
      %p93 = scmp.eq.s32.totalorder %s25, 0
      %p94 = por %p92, %p93
      %s95 = ssub.s32 %s19, %s26
      %p96 = scmp.eq.s32.totalorder %s95, 0
      %s98 = sadd.s32 %s97, 1
      %s99 = scalar_select %p96, %s97, %s98
      %p102 = pneg %p96
      %p103 = scmp.eq.s32.totalorder %s19, 1
      %p104 = por %p102, %p103
      %p105 = scmp.ne.s32.totalorder %s97, %s100
      %p106 = scmp.eq.s32.totalorder %s19, 0
      %p107 = por %p105, %p106
      %p108 = scmp.ne.s32.totalorder %s97, %s100
      %p109 = scmp.eq.s32.totalorder %s24, 1
      %p110 = por %p108, %p109
      %p111 = scmp.ne.s32.totalorder %s100, %s101
      %p112 = scmp.eq.s32.totalorder %s24, 0
      %p113 = por %p111, %p112
      %p114 = scmp.ne.s32.totalorder %s100, %s101
      %p115 = scmp.eq.s32.totalorder %s25, 1
      %p116 = por %p114, %p115
      %p118 = scmp.ne.s32.totalorder %s101, %s117
      %p119 = scmp.eq.s32.totalorder %s25, 0
      %p120 = por %p118, %p119
      %s121 = ssub.s32 %s19, %s26
      %p122 = scmp.eq.s32.totalorder %s121, 0
      %s124 = sadd.s32 %s123, 1
      %s125 = scalar_select %p122, %s123, %s124
      %p128 = pneg %p122
      %p129 = scmp.eq.s32.totalorder %s19, 1
      %p130 = por %p128, %p129
      %p131 = scmp.ne.s32.totalorder %s123, %s126
      %p132 = scmp.eq.s32.totalorder %s19, 0
      %p133 = por %p131, %p132
      %p134 = scmp.ne.s32.totalorder %s123, %s126
      %p135 = scmp.eq.s32.totalorder %s24, 1
      %p136 = por %p134, %p135
      %p137 = scmp.ne.s32.totalorder %s126, %s127
      %p138 = scmp.eq.s32.totalorder %s24, 0
      %p139 = por %p137, %p138
      %p140 = scmp.ne.s32.totalorder %s126, %s127
      %p141 = scmp.eq.s32.totalorder %s25, 1
      %p142 = por %p140, %p141
      %p144 = scmp.ne.s32.totalorder %s127, %s143
      %p145 = scmp.eq.s32.totalorder %s25, 0
      %p146 = por %p144, %p145
      %p147 = scmp.le.s32.totalorder 1, %s19
      %p148 = scmp.lt.s32.totalorder %s19, 3
      %p149 = pnand %p147, %p148
      %p150 = pneg %p149
      // Predicated region
      $region9: #{tpu_custom_call.1} parent=5 // pred_check
        _
      $region10: #{tpu_custom_call.1} parent=5 // pred_check_branch
        %152 = sbr.rel (%p149) target = $region12
      $region11: #{tpu_custom_call.1} parent=5 // pred_region
        %s153 = ssub.s32 %s19, 1
        // Predicated region
        $region13: #{tpu_custom_call.1} parent=11 // pred_check
          %p154 = pneg %p66
        $region14: #{tpu_custom_call.1} parent=11 // pred_check_branch
          %156 = sbr.rel (%p154) target = $region16
        $region15: #{tpu_custom_call.1} parent=11 // pred_region
          _
        $region16: #{tpu_custom_call.1} parent=11 // pred_fallthru
          _
        // Predicated region
        $region17: #{tpu_custom_call.1} parent=11 // pred_check
          %p157 = pneg %p87
        $region18: #{tpu_custom_call.1} parent=11 // pred_check_branch
          %159 = sbr.rel (%p157) target = $region20
        $region19: #{tpu_custom_call.1} parent=11 // pred_region
          _
        $region20: #{tpu_custom_call.1} parent=11 // pred_fallthru
          _
      $region12: #{tpu_custom_call.1} parent=5 // pred_fallthru
        _
      %p160 = scmp.lt.s32.totalorder %s19, 2
      // Predicated region
      $region21: #{tpu_custom_call.1} parent=5 // pred_check
        %p161 = pneg %p160
      $region22: #{tpu_custom_call.1} parent=5 // pred_check_branch
        %163 = sbr.rel (%p161) target = $region24
      $region23: #{tpu_custom_call.1} parent=5 // pred_region
        // Predicated region
        $region25: #{tpu_custom_call.1} parent=23 // pred_check
          %p164 = pneg %p39
        $region26: #{tpu_custom_call.1} parent=23 // pred_check_branch
          %166 = sbr.rel (%p164) target = $region28
        $region27: #{tpu_custom_call.1} parent=23 // pred_region
          %s167 = smul.u32 4, %s19
          %p168 = scmp.lt.s32.totalorder %s167, 7
          %s169 = scalar_select %p168, %s167, 7
          %s170 = smul.addr %s169, 8
          %s171 = scalar_lea.vmem %s1, %s170
          %s172 = smul.u32 4, %s19
        $region28: #{tpu_custom_call.1} parent=23 // pred_fallthru
          _
      $region24: #{tpu_custom_call.1} parent=5 // pred_fallthru
        _
      %p173 = scmp.le.s32.totalorder 1, %s19
      %p174 = scmp.lt.s32.totalorder %s19, 3
      %p175 = pnand %p173, %p174
      %p176 = pneg %p175
      // Predicated region
      $region29: #{tpu_custom_call.1} parent=5 // pred_check
        _
      $region30: #{tpu_custom_call.1} parent=5 // pred_check_branch
        %178 = sbr.rel (%p175) target = $region32
      $region31: #{tpu_custom_call.1} parent=5 // pred_region
        %s179 = ssub.s32 %s19, 1
        %s180 = smul.u32 4, %s24
        %p181 = scmp.lt.s32.totalorder %s180, 7
        %s182 = scalar_select %p181, %s180, 7
        %s183 = smul.addr %s182, 8
        %s184 = scalar_lea.vmem %s1, %s183
        %p185 = pneg %p45
        %p186 = pneg %p42
        %p187 = pneg %p66
        %p188 = pneg %p63
        %p189 = pneg %p87
        %p190 = pneg %p84
        %p191 = pneg %p113
        %p192 = pneg %p110
        %s193 = sand.u32 %s100, 1
        %s194 = scalar_lea.sflag [#allocation5], %s193
        %s195 = sand.u32 %s100, 1
        %s196 = smul.addr %s195, 64
        %s197 = scalar_lea.vmem [#allocation4], %s196
        %p198 = pneg %p139
        %p199 = pneg %p136
        %s200 = sand.u32 %s126, 1
        %s201 = scalar_lea.sflag [#allocation7], %s200
        %s202 = sand.u32 %s126, 1
        %s203 = smul.addr %s202, 16
        %s204 = scalar_lea.vmem [#allocation6], %s203
        %s205 = smul.u32 4, %s24
        %p206 = scmp.lt.s32.totalorder %s205, 7
        %s207 = scalar_select %p206, %s205, 7
        %s208 = smul.addr %s207, 8
        %s209 = scalar_lea.vmem %s1, %s208
        %s210 = smul.u32 4, %s24
        %s211 = smul.u32 4, %s24
        %s212 = smul.u32 4, %s24
        %v214 = vld [vmem:[%s209] sm:$0xff]
        %v215 = vld [vmem:[%s209 + $0x8] sm:$0xff]
        %v216 = vld [vmem:[%s209 + $0x10] sm:$0xff]
        %v217 = vld [vmem:[%s209 + $0x18] sm:$0xff]
        %v218 = vpack.c.bf16 %v215, %v214
        %v219 = vpack.c.bf16 %v217, %v216
        %v220 = vld [vmem:[%s2] sm:$0xff]
        %v221 = vld [vmem:[%s2 + $0x8] sm:$0xf]
        %v222 = vld [vmem:[%s2 + $0xc] sm:$0xff]
        %v223 = vld [vmem:[%s2 + $0x14] sm:$0xf]
        %v224 = vld [vmem:[%s2 + $0x18] sm:$0xff]
        %v225 = vld [vmem:[%s2 + $0x20] sm:$0xf]
        %v226 = vld [vmem:[%s2 + $0x24] sm:$0xff]
        %v227 = vld [vmem:[%s2 + $0x2c] sm:$0xf]
        %v236 = vunpack.c.l.b16 %v220
        %v237 = vunpack.c.h.b16 %v220
        %v238 = vunpack.c.l.b16 %v221
        %v239 = vunpack.c.l.b16 %v222
        %v240 = vunpack.c.h.b16 %v222
        %v241 = vunpack.c.l.b16 %v223
        %v242 = vunpack.c.l.b16 %v224
        %v243 = vunpack.c.h.b16 %v224
        %v244 = vunpack.c.l.b16 %v225
        %v245 = vunpack.c.l.b16 %v226
        %v246 = vunpack.c.h.b16 %v226
        %v247 = vunpack.c.l.b16 %v227
        %v248 = vpack.c.b16 %v239, %v236
        %v249 = vpack.c.b16 %v240, %v237
        %v250 = vpack.c.b16 %v241, %v238
        %v251 = vpack.c.b16 %v245, %v242
        %v252 = vpack.c.b16 %v246, %v243
        %v253 = vpack.c.b16 %v247, %v244
        %vm260 = vcmask 261120
        %v262 = vsel %vm260, %v218, 0
        %v265 = vsel %vm260, %v219, 0
        %267 = vmatprep.subr.bf16.mxu0 %v249
        %268 = vmatpush1.bf16.msra.mxu0 %v248
        %269 = vmatprep.subr.bf16.mxu0 %v252
        %270 = vmatpush1.bf16.msra.mxu0 %v251
        %271 = vmatprep.subr.bf16.mxu0 0
        %272 = vmatpush1.bf16.msra.mxu0 0
        %273 = vmatprep.subr.bf16.mxu0 0
        %274 = vmatpush1.bf16.msra.mxu0 0
        %275 = vmatprep.subr.bf16.mxu0 0
        %276 = vmatpush1.bf16.msra.mxu0 0
        %277 = vmatprep.subr.bf16.mxu0 0
        %278 = vmatpush1.bf16.msra.mxu0 0
        %279 = vmatprep.subr.bf16.mxu0 0
        %280 = vmatpush1.bf16.msra.mxu0 0
        %281 = vmatprep.subr.bf16.mxu0 0
        %282 = vmatpush1.bf16.msra.mxu0 0
        %283 = vmatprep.subr.bf16.mxu0 0
        %284 = vmatpush1.bf16.msra.mxu0 0
        %285 = vmatprep.subr.bf16.mxu0 0
        %286 = vmatpush1.bf16.msra.mxu0 0
        %287 = vmatprep.subr.bf16.mxu0 0
        %288 = vmatpush1.bf16.msra.mxu0 0
        %289 = vmatprep.subr.bf16.mxu0 0
        %290 = vmatpush1.bf16.msra.mxu0 0
        %291 = vmatprep.subr.bf16.mxu0 0
        %292 = vmatpush1.bf16.msra.mxu0 0
        %293 = vmatprep.subr.bf16.mxu0 0
        %294 = vmatpush1.bf16.msra.mxu0 0
        %295 = vmatprep.subr.bf16.mxu0 0
        %296 = vmatpush1.bf16.msra.mxu0 0
        %297 = vmatprep.subr.bf16.mxu0 0
        %298 = vmatpush1.bf16.msra.mxu0 0
        %299 = vmatprep.mubr.bf16.mxu0 0
        %300 = vmatmul.mubr.bf16.gmra.mrb[0].mxu0 %v262
        %v301 = vpop.f32.mrb[0].mxu0
        %v302 = vadd.f32 0.0, %v301
        %v303 = vpop.f32.mrb[0].mxu0
        %v304 = vadd.f32 0.0, %v303
        %v305 = vpop.f32.mrb[0].mxu0
        %v306 = vadd.f32 0.0, %v305
        %v307 = vpop.f32.mrb[0].mxu0
        %v308 = vadd.f32 0.0, %v307
        %309 = vmatprep.mubr.bf16.mxu0 0
        %310 = vmatmul.mubr.bf16.gmra.mrb[0].mxu0 %v265
        %v311 = vpop.f32.mrb[0].mxu0
        %v312 = vadd.f32 0.0, %v311
        %v313 = vpop.f32.mrb[0].mxu0
        %v314 = vadd.f32 0.0, %v313
        %v315 = vpop.f32.mrb[0].mxu0
        %v316 = vadd.f32 0.0, %v315
        %v317 = vpop.f32.mrb[0].mxu0
        %v318 = vadd.f32 0.0, %v317
        %319 = vdwg.mxu0
        %320 = vmatprep.subr.bf16.mxu0 0
        %321 = vmatpush1.bf16.msra.mxu0 %v250
        %322 = vmatprep.subr.bf16.mxu0 0
        %323 = vmatpush1.bf16.msra.mxu0 %v253
        %324 = vmatprep.subr.bf16.mxu0 0
        %325 = vmatpush1.bf16.msra.mxu0 0
        %326 = vmatprep.subr.bf16.mxu0 0
        %327 = vmatpush1.bf16.msra.mxu0 0
        %328 = vmatprep.subr.bf16.mxu0 0
        %329 = vmatpush1.bf16.msra.mxu0 0
        %330 = vmatprep.subr.bf16.mxu0 0
        %331 = vmatpush1.bf16.msra.mxu0 0
        %332 = vmatprep.subr.bf16.mxu0 0
        %333 = vmatpush1.bf16.msra.mxu0 0
        %334 = vmatprep.subr.bf16.mxu0 0
        %335 = vmatpush1.bf16.msra.mxu0 0
        %336 = vmatprep.subr.bf16.mxu0 0
        %337 = vmatpush1.bf16.msra.mxu0 0
        %338 = vmatprep.subr.bf16.mxu0 0
        %339 = vmatpush1.bf16.msra.mxu0 0
        %340 = vmatprep.subr.bf16.mxu0 0
        %341 = vmatpush1.bf16.msra.mxu0 0
        %342 = vmatprep.subr.bf16.mxu0 0
        %343 = vmatpush1.bf16.msra.mxu0 0
        %344 = vmatprep.subr.bf16.mxu0 0
        %345 = vmatpush1.bf16.msra.mxu0 0
        %346 = vmatprep.subr.bf16.mxu0 0
        %347 = vmatpush1.bf16.msra.mxu0 0
        %348 = vmatprep.subr.bf16.mxu0 0
        %349 = vmatpush1.bf16.msra.mxu0 0
        %350 = vmatprep.subr.bf16.mxu0 0
        %351 = vmatpush1.bf16.msra.mxu0 0
        %352 = vmatprep.mubr.bf16.mxu0 0
        %353 = vmatmul.mubr.bf16.gmra.mrb[0].mxu0 %v262
        %v354 = vpop.f32.mrb[0].mxu0
        %v355 = vadd.f32 0.0, %v354
        %v356 = vpop.f32.mrb[0].mxu0
        %v357 = vpop.f32.mrb[0].mxu0
        %v358 = vadd.f32 0.0, %v357
        %v359 = vpop.f32.mrb[0].mxu0
        %360 = vmatprep.mubr.bf16.mxu0 0
        %361 = vmatmul.mubr.bf16.gmra.mrb[0].mxu0 %v265
        %v362 = vpop.f32.mrb[0].mxu0
        %v363 = vadd.f32 0.0, %v362
        %v364 = vpop.f32.mrb[0].mxu0
        %v365 = vpop.f32.mrb[0].mxu0
        %v366 = vadd.f32 0.0, %v365
        %v367 = vpop.f32.mrb[0].mxu0
        %368 = vdwg.mxu0
        %v369 = vld [vmem:[%s3] sm:$0x3]
        %v371 = vlaneseq
        %v372 = vshrl.u32 %v371, 7
        %v373 = vsub.s32 0, %v372
        %v374 = vrot.slane %v369, %v373
        %v375 = vlaneseq
        %v376 = vshrl.u32 %v375, 7
        %v377 = vsub.s32 1, %v376
        %v378 = vrot.slane %v369, %v377
        %v381 = vadd.f32 %v302, %v374
        %v382 = vadd.f32 %v304, %v378
        %v383 = vadd.f32 %v306, %v374
        %v384 = vadd.f32 %v308, %v378
        %v385 = vadd.f32 %v312, %v374
        %v386 = vadd.f32 %v314, %v378
        %v387 = vadd.f32 %v316, %v374
        %v388 = vadd.f32 %v318, %v378
        %389 = vst [vmem:[%s197] sm:$0xff] %v381
        %390 = vst [vmem:[%s197 + $0x8] sm:$0xff] %v382
        %391 = vst [vmem:[%s197 + $0x10] sm:$0xff] %v383
        %392 = vst [vmem:[%s197 + $0x18] sm:$0xff] %v384
        %393 = vst [vmem:[%s197 + $0x20] sm:$0xff] %v385
        %394 = vst [vmem:[%s197 + $0x28] sm:$0xff] %v386
        %395 = vst [vmem:[%s197 + $0x30] sm:$0xff] %v387
        %396 = vst [vmem:[%s197 + $0x38] sm:$0xff] %v388
        %v397 = vld [vmem:[%s3 + $0x2] sm:$0x1]
        %v399 = vlaneseq
        %v400 = vshrl.u32 %v399, 7
        %v401 = vsub.s32 0, %v400
        %v402 = vrot.slane %v397, %v401
        %v404 = vadd.f32 %v355, %v402
        %v405 = vadd.f32 %v358, %v402
        %v406 = vadd.f32 %v363, %v402
        %v407 = vadd.f32 %v366, %v402
        %s408 = sld [smem:[#allocation3]]
        %v409 = vstv %s408
        %vm410 = vcmp.gt.f32.partialorder %v404, %v409
        %vm411 = vcmp.gt.f32.partialorder %v405, %v409
        %vm412 = vcmp.gt.f32.partialorder %v406, %v409
        %vm413 = vcmp.gt.f32.partialorder %v407, %v409
        %v414 = vsel %vm410, 1.0, 0.0
        %v415 = vsel %vm411, 1.0, 0.0
        %v416 = vsel %vm412, 1.0, 0.0
        %v417 = vsel %vm413, 1.0, 0.0
        %v418 = vpack.c.bf16 %v415, %v414
        %v419 = vpack.c.bf16 %v417, %v416
        %v422 = vunpack.c.l.b16 %v418
        %v423 = vunpack.c.h.b16 %v418
        %v424 = vunpack.c.l.b16 %v419
        %v425 = vunpack.c.h.b16 %v419
        %v426 = vpack.c.b16 %v422, %v422
        %v427 = vpack.c.b16 %v423, %v423
        %v428 = vpack.c.b16 %v424, %v424
        %v429 = vpack.c.b16 %v425, %v425
        %434 = vst [vmem:[%s204] sm:$0xf] %v426
        %435 = vst [vmem:[%s204 + $0x4] sm:$0xf] %v427
        %436 = vst [vmem:[%s204 + $0x8] sm:$0xf] %v428
        %437 = vst [vmem:[%s204 + $0xc] sm:$0xf] %v429
        %s438 = sand.u32 %s100, 1
        %s439 = scalar_lea.sflag [#allocation5], %s438
        %s440 = sand.u32 %s100, 1
        %s441 = smul.addr %s440, 64
        %s442 = scalar_lea.vmem [#allocation4], %s441
        %s443 = sand.u32 %s126, 1
        %s444 = scalar_lea.sflag [#allocation7], %s443
        %s445 = sand.u32 %s126, 1
        %s446 = smul.addr %s445, 16
        %s447 = scalar_lea.vmem [#allocation6], %s446
        // Predicated region
        $region33: #{tpu_custom_call.1} parent=31 // pred_check
          %p448 = pneg %p110
        $region34: #{tpu_custom_call.1} parent=31 // pred_check_branch
          %450 = sbr.rel (%p448) target = $region36
        $region35: #{tpu_custom_call.1} parent=31 // pred_region
          %s451 = smul.u32 4, %s24
          %s453 = ssub.s32 1024, 1024
          %454 = vsyncadd %s439, %s453
          %s455 = smul.addr %s451, 2
          %s456 = smul.addr %s455, 128
          %s457 = scalar_lea.hbm %s4, %s456
          %s458 = sshll.u32 %s442, 4
          %s459 = int_to_ptr.vmem [resolvable:$true] %s458
          %464 = dma.vmem_to_hbm [thread:$0]  %s459, 1024, %s457, %s439, 256, 256, 16
        $region36: #{tpu_custom_call.1} parent=31 // pred_fallthru
          _
        // Predicated region
        $region37: #{tpu_custom_call.1} parent=31 // pred_check
          %p465 = pneg %p136
        $region38: #{tpu_custom_call.1} parent=31 // pred_check_branch
          %467 = sbr.rel (%p465) target = $region40
        $region39: #{tpu_custom_call.1} parent=31 // pred_region
          %s468 = smul.u32 4, %s24
          %s470 = ssub.s32 256, 256
          %471 = vsyncadd %s444, %s470
          %s472 = smul.addr %s468, 64
          %s473 = scalar_lea.hbm %s5, %s472
          %s474 = sshll.u32 %s447, 4
          %s475 = int_to_ptr.vmem [resolvable:$true] %s474
          %480 = dma.vmem_to_hbm [thread:$0]  %s475, 256, %s473, %s444, 64, 64, 4
        $region40: #{tpu_custom_call.1} parent=31 // pred_fallthru
          _
      $region32: #{tpu_custom_call.1} parent=5 // pred_fallthru
        _
      %p481 = scmp.le.s32.totalorder 2, %s19
      // Predicated region
      $region41: #{tpu_custom_call.1} parent=5 // pred_check
        %p482 = pneg %p481
      $region42: #{tpu_custom_call.1} parent=5 // pred_check_branch
        %484 = sbr.rel (%p482) target = $region44
      $region43: #{tpu_custom_call.1} parent=5 // pred_region
        %s485 = ssub.s32 %s19, 2
        // Predicated region
        $region45: #{tpu_custom_call.1} parent=43 // pred_check
          %p486 = pneg %p116
        $region46: #{tpu_custom_call.1} parent=43 // pred_check_branch
          %488 = sbr.rel (%p486) target = $region48
        $region47: #{tpu_custom_call.1} parent=43 // pred_region
          %s489 = sand.u32 %s101, 1
          %s490 = scalar_lea.sflag [#allocation5], %s489
          %s491 = sand.u32 %s101, 1
          %s492 = smul.addr %s491, 64
          %s493 = scalar_lea.vmem [#allocation4], %s492
          %494 = dma.done %s490, 1024
        $region48: #{tpu_custom_call.1} parent=43 // pred_fallthru
          _
        // Predicated region
        $region49: #{tpu_custom_call.1} parent=43 // pred_check
          %p495 = pneg %p142
        $region50: #{tpu_custom_call.1} parent=43 // pred_check_branch
          %497 = sbr.rel (%p495) target = $region52
        $region51: #{tpu_custom_call.1} parent=43 // pred_region
          %s498 = sand.u32 %s127, 1
          %s499 = scalar_lea.sflag [#allocation7], %s498
          %s500 = sand.u32 %s127, 1
          %s501 = smul.addr %s500, 16
          %s502 = scalar_lea.vmem [#allocation6], %s501
          %503 = dma.done %s499, 256
        $region52: #{tpu_custom_call.1} parent=43 // pred_fallthru
          _
      $region44: #{tpu_custom_call.1} parent=5 // pred_fallthru
        _
    $region6: #{tpu_custom_call.1} parent=1 // loop_footer
      %s23 = sadd.s32 1, %s19
    $region7: #{tpu_custom_call.1} parent=1 // loop_footer_branch
      %18 = sbr.rel target = $region3
    $region8: #{tpu_custom_call.1} parent=1 // loop_exit
      _
    %504 = vsyncpa [#allocation5], 1
    %s505 = scalar_lea.sflag [#allocation5], 1
    %506 = vsyncpa %s505, 1
    %507 = vsyncpa [#allocation7], 1
    %s508 = scalar_lea.sflag [#allocation7], 1
    %509 = vsyncpa %s508, 1

</llo_original>
